<compile_context>
chip_gen: v6e
topology: v6e:2x2x1
jax: 0.10.0
libtpu: 0.0.40
codegen_flags: <defaults>
</compile_context>

<pallas_src>
import functools

import jax
import jax.numpy as jnp
from jax.experimental import pallas as pl
from jax.experimental.pallas import tpu as pltpu

EPS = 1e-5  # PyTorch BatchNorm1d default


def _round_up(n, m=128):
    return ((n + m - 1) // m) * m


def _fused_vmem_limit():
    """3/4 of physical VMEM, capped at 96 MiB (v5e/v6e: 96 MiB, v7x: 48 MiB)."""
    try:
        info = pltpu.get_tpu_info()
        cap = int(getattr(info, "vmem_capacity_bytes", 64 * 1024 * 1024))
    except Exception:
        cap = 64 * 1024 * 1024
    return int(min(cap * 3 // 4, 96 * 1024 * 1024))


# --------------------------------------------------------------------------
# Fused single-block kernel (whole batch resident in VMEM; small/medium B).
# --------------------------------------------------------------------------
def _fused_kernel(x_ref, w1_ref, w2_ref, w3_ref, bn_ref, o_ref):
    B = x_ref.shape[0]
    H1 = w1_ref.shape[1]
    H2 = w2_ref.shape[1]
    O = w3_ref.shape[1]
    inv_b = jnp.float32(1.0 / B)
    ones = jnp.ones((1, B), jnp.float32)  # hoisted; reused for all reductions

    # ---- layer 1: linear (no bias) -> BN (batch stats, folded) -> ReLU ----
    x = x_ref[...]
    h1 = jnp.dot(x.astype(w1_ref.dtype), w1_ref[...],
                 preferred_element_type=jnp.float32)
    s1 = jnp.dot(ones, h1, preferred_element_type=jnp.float32)       # sum
    q1 = jnp.dot(ones, h1 * h1, preferred_element_type=jnp.float32)  # sum sq
    mu1 = s1 * inv_b
    var1 = jnp.maximum(q1 * inv_b - mu1 * mu1, 0.0)
    scale1 = bn_ref[0:1, :H1] * jax.lax.rsqrt(var1 + EPS)
    shift1 = bn_ref[1:2, :H1] - mu1 * scale1
    a1 = jnp.maximum(h1 * scale1 + shift1, 0.0)

    # ---- layer 2 ----
    h2 = jnp.dot(a1.astype(w2_ref.dtype), w2_ref[...],
                 preferred_element_type=jnp.float32)
    s2 = jnp.dot(ones, h2, preferred_element_type=jnp.float32)
    q2 = jnp.dot(ones, h2 * h2, preferred_element_type=jnp.float32)
    mu2 = s2 * inv_b
    var2 = jnp.maximum(q2 * inv_b - mu2 * mu2, 0.0)
    scale2 = bn_ref[2:3, :H2] * jax.lax.rsqrt(var2 + EPS)
    shift2 = bn_ref[3:4, :H2] - mu2 * scale2
    a2 = jnp.maximum(h2 * scale2 + shift2, 0.0)

    # ---- layer 3: linear + bias (lane-padded output) ----
    out = jnp.dot(a2.astype(w3_ref.dtype), w3_ref[...],
                  preferred_element_type=jnp.float32) + bn_ref[4:5, :O]
    o_ref[...] = out.astype(o_ref.dtype)


# --------------------------------------------------------------------------
# Batch-tiled 3-stage pipeline (global BN stats, weights VMEM-resident).
# Stages 1/2 have a leading "parallel" core-shard axis (v7x 2-TC) and emit
# per-shard partial sum / sum-of-squares; the fold happens in the consumer.
# --------------------------------------------------------------------------
def _lin_stats_kernel(x_ref, w_ref, h_ref, sum_ref, ssq_ref):
    @pl.when(pl.program_id(1) == 0)
    def _():
        sum_ref[...] = jnp.zeros_like(sum_ref)
        ssq_ref[...] = jnp.zeros_like(ssq_ref)

    h = jnp.dot(x_ref[...].astype(w_ref.dtype), w_ref[...],
                preferred_element_type=jnp.float32)
    h_ref[...] = h.astype(h_ref.dtype)          # bf16 intermediate (HBM /2)
    ones = jnp.ones((1, h.shape[0]), jnp.float32)
    sum_ref[...] += jnp.dot(ones, h,
                            preferred_element_type=jnp.float32
                            ).reshape(sum_ref.shape)
    ssq_ref[...] += jnp.dot(ones, h * h,
                            preferred_element_type=jnp.float32
                            ).reshape(ssq_ref.shape)


def _bn_relu_lin_stats_kernel(h_ref, s_ref, q_ref, g_ref, b_ref, w_ref,
                              o_ref, sum_ref, ssq_ref, *, inv_b):
    @pl.when(pl.program_id(1) == 0)
    def _():
        sum_ref[...] = jnp.zeros_like(sum_ref)
        ssq_ref[...] = jnp.zeros_like(ssq_ref)

    # In-kernel BN fold (sums over the core-shard partials; rsqrt -> EUP).
    s = jnp.sum(s_ref[...], axis=0)              # (1, Hp)
    q = jnp.sum(q_ref[...], axis=0)
    mu = s * inv_b
    var = jnp.maximum(q * inv_b - mu * mu, 0.0)
    scale = g_ref[...] * jax.lax.rsqrt(var + EPS)
    shift = b_ref[...] - mu * scale

    a = jnp.maximum(h_ref[...].astype(jnp.float32) * scale + shift, 0.0)
    h = jnp.dot(a.astype(w_ref.dtype), w_ref[...],
                preferred_element_type=jnp.float32)
    o_ref[...] = h.astype(o_ref.dtype)
    ones = jnp.ones((1, h.shape[0]), jnp.float32)
    sum_ref[...] += jnp.dot(ones, h,
                            preferred_element_type=jnp.float32
                            ).reshape(sum_ref.shape)
    ssq_ref[...] += jnp.dot(ones, h * h,
                            preferred_element_type=jnp.float32
                            ).reshape(ssq_ref.shape)


def _bn_relu_lin_bias_kernel(h_ref, s_ref, q_ref, g_ref, b_ref, w_ref,
                             bias_ref, o_ref, *, inv_b):
    s = jnp.sum(s_ref[...], axis=0)
    q = jnp.sum(q_ref[...], axis=0)
    mu = s * inv_b
    var = jnp.maximum(q * inv_b - mu * mu, 0.0)
    scale = g_ref[...] * jax.lax.rsqrt(var + EPS)
    shift = b_ref[...] - mu * scale

    a = jnp.maximum(h_ref[...].astype(jnp.float32) * scale + shift, 0.0)
    out = jnp.dot(a.astype(w_ref.dtype), w_ref[...],
                  preferred_element_type=jnp.float32) + bias_ref[...]
    o_ref[...] = out.astype(o_ref.dtype)


# --------------------------------------------------------------------------
# Parameter prep (pad once, outside the per-call path) and wrappers.
# --------------------------------------------------------------------------
def prepare_params(params, matmul_dtype=jnp.float32):
    """Lane-pad weights to 128-multiples, cast matmul operands, pack the five
    BN/bias vectors into one (8, Pmax) slab (fused path) and keep padded
    per-layer gamma/beta/bias rows (tiled path)."""
    d0, h1 = params["w1t"].shape
    h2 = params["w2t"].shape[1]
    o = params["w3t"].shape[1]
    h1p, h2p, op = _round_up(h1), _round_up(h2), _round_up(o)
    pmax = max(h1p, h2p, op)

    def pad2(w, r, c):
        return jnp.pad(w, ((0, r - w.shape[0]), (0, c - w.shape[1])))

    def pad_row(v, c):
        v = v.reshape(1, -1)
        return jnp.pad(v, ((0, 0), (0, c - v.shape[1]))).astype(jnp.float32)

    g1p, b1p = pad_row(params["g1"], h1p), pad_row(params["b1"], h1p)
    g2p, b2p = pad_row(params["g2"], h2p), pad_row(params["b2"], h2p)
    b3p = pad_row(params["b3"], op)

    bn = jnp.zeros((8, pmax), jnp.float32)
    bn = bn.at[0, :h1].set(params["g1"].reshape(-1))
    bn = bn.at[1, :h1].set(params["b1"].reshape(-1))
    bn = bn.at[2, :h2].set(params["g2"].reshape(-1))
    bn = bn.at[3, :h2].set(params["b2"].reshape(-1))
    bn = bn.at[4, :o].set(params["b3"].reshape(-1))

    return dict(
        w1=pad2(params["w1t"], d0, h1p).astype(matmul_dtype),
        w2=pad2(params["w2t"], h1p, h2p).astype(matmul_dtype),
        w3=pad2(params["w3t"], h2p, op).astype(matmul_dtype),
        bn=bn,
        g1=g1p, b1=b1p, g2=g2p, b2=b2p, b3=b3p,
        dims=dict(d0=d0, h1=h1, h2=h2, o=o, h1p=h1p, h2p=h2p, op=op),
    )


def multiple_nonlinear_classifier(x, prepped):
    """Fused single-block path: whole batch in VMEM (use for small/medium B)."""
    dims = prepped["dims"]
    B = x.shape[0]
    vmem = pl.BlockSpec(memory_space=pltpu.MemorySpace.VMEM)
    out = pl.pallas_call(
        _fused_kernel,
        out_shape=jax.ShapeDtypeStruct((B, dims["op"]), jnp.float32),
        in_specs=[vmem] * 5,
        out_specs=vmem,
        compiler_params=pltpu.CompilerParams(
            vmem_limit_bytes=_fused_vmem_limit()),
    )(x, prepped["w1"], prepped["w2"], prepped["w3"], prepped["bn"])
    return out[:, :dims["o"]]


def multiple_nonlinear_classifier_tiled(x, prepped, *, tb=512,
                                        h_dtype=jnp.bfloat16):
    """Batch-tiled path for large B: grid over batch tiles, weights resident,
    GLOBAL BatchNorm statistics via cross-tile sum/sum-sq accumulation.
    Stages 1/2 are 2-way core-sharded ("parallel" axis) when possible; the
    BN fold is done inside the consuming kernels from raw partial stats."""
    dims = prepped["dims"]
    B, D0 = x.shape
    tb = min(tb, B)
    assert B % tb == 0 and tb % 8 == 0, "batch must be a multiple of the tile"
    nbt = B // tb
    nshard = 2 if (nbt % 2 == 0 and nbt >= 2) else 1
    nper = nbt // nshard
    h1p, h2p, op = dims["h1p"], dims["h2p"], dims["op"]
    w1, w2, w3 = prepped["w1"], prepped["w2"], prepped["w3"]
    inv_b = 1.0 / B

    sem12 = pltpu.CompilerParams(
        dimension_semantics=("parallel", "arbitrary"))

    # ---- stage 1: h1 = x @ w1, per-shard partial sum / sum-of-squares ----
    h1, s1, q1 = pl.pallas_call(
        _lin_stats_kernel,
        grid=(nshard, nper),
        in_specs=[pl.BlockSpec((tb, D0), lambda c, i: (c * nper + i, 0)),
                  pl.BlockSpec((D0, h1p), lambda c, i: (0, 0))],
        out_specs=[pl.BlockSpec((tb, h1p), lambda c, i: (c * nper + i, 0)),
                   pl.BlockSpec((1, 1, h1p), lambda c, i: (c, 0, 0)),
                   pl.BlockSpec((1, 1, h1p), lambda c, i: (c, 0, 0))],
        out_shape=[jax.ShapeDtypeStruct((B, h1p), h_dtype),
                   jax.ShapeDtypeStruct((nshard, 1, h1p), jnp.float32),
                   jax.ShapeDtypeStruct((nshard, 1, h1p), jnp.float32)],
        compiler_params=sem12,
    )(x, w1)

    # ---- stage 2: in-kernel BN1 fold + ReLU, h2 = a1 @ w2, stats of h2 ----
    h2, s2, q2 = pl.pallas_call(
        functools.partial(_bn_relu_lin_stats_kernel, inv_b=inv_b),
        grid=(nshard, nper),
        in_specs=[pl.BlockSpec((tb, h1p), lambda c, i: (c * nper + i, 0)),
                  pl.BlockSpec((nshard, 1, h1p), lambda c, i: (0, 0, 0)),
                  pl.BlockSpec((nshard, 1, h1p), lambda c, i: (0, 0, 0)),
                  pl.BlockSpec((1, h1p), lambda c, i: (0, 0)),
                  pl.BlockSpec((1, h1p), lambda c, i: (0, 0)),
                  pl.BlockSpec((h1p, h2p), lambda c, i: (0, 0))],
        out_specs=[pl.BlockSpec((tb, h2p), lambda c, i: (c * nper + i, 0)),
                   pl.BlockSpec((1, 1, h2p), lambda c, i: (c, 0, 0)),
                   pl.BlockSpec((1, 1, h2p), lambda c, i: (c, 0, 0))],
        out_shape=[jax.ShapeDtypeStruct((B, h2p), h_dtype),
                   jax.ShapeDtypeStruct((nshard, 1, h2p), jnp.float32),
                   jax.ShapeDtypeStruct((nshard, 1, h2p), jnp.float32)],
        compiler_params=sem12,
    )(h1, s1, q1, prepped["g1"], prepped["b1"], w2)

    # ---- stage 3: in-kernel BN2 fold + ReLU, out = a2 @ w3 + b3 ----
    out = pl.pallas_call(
        functools.partial(_bn_relu_lin_bias_kernel, inv_b=inv_b),
        grid=(nbt,),
        in_specs=[pl.BlockSpec((tb, h2p), lambda i: (i, 0)),
                  pl.BlockSpec((nshard, 1, h2p), lambda i: (0, 0, 0)),
                  pl.BlockSpec((nshard, 1, h2p), lambda i: (0, 0, 0)),
                  pl.BlockSpec((1, h2p), lambda i: (0, 0)),
                  pl.BlockSpec((1, h2p), lambda i: (0, 0)),
                  pl.BlockSpec((h2p, op), lambda i: (0, 0)),
                  pl.BlockSpec((1, op), lambda i: (0, 0))],
        out_specs=pl.BlockSpec((tb, op), lambda i: (i, 0)),
        out_shape=jax.ShapeDtypeStruct((B, op), jnp.float32),
        compiler_params=pltpu.CompilerParams(
            dimension_semantics=("parallel",)),
    )(h2, s2, q2, prepped["g2"], prepped["b2"], w3, prepped["b3"])

    return out[:, :dims["o"]]


# --------------------------------------------------------------------------
# Parameter init (PyTorch-default-like) and pure-JAX reference.
# --------------------------------------------------------------------------
def init_params(key, input_size_list, output_size=10):
    d0, h1, h2 = input_size_list
    k1, k2, k3, k4 = jax.random.split(key, 4)

    def linear_w(k, fan_in, fan_out):
        bound = 1.0 / jnp.sqrt(fan_in)
        return jax.random.uniform(k, (fan_in, fan_out), jnp.float32, -bound, bound)

    bound3 = 1.0 / jnp.sqrt(h2)
    return dict(
        w1t=linear_w(k1, d0, h1),
        g1=jnp.ones((1, h1), jnp.float32), b1=jnp.zeros((1, h1), jnp.float32),
        w2t=linear_w(k2, h1, h2),
        g2=jnp.ones((1, h2), jnp.float32), b2=jnp.zeros((1, h2), jnp.float32),
        w3t=linear_w(k3, h2, output_size),
        b3=jax.random.uniform(k4, (1, output_size), jnp.float32, -bound3, bound3),
    )


def _reference(x, p):
    h = x @ p["w1t"]
    mu, var = jnp.mean(h, 0, keepdims=True), jnp.var(h, 0, keepdims=True)
    h = jnp.maximum((h - mu) / jnp.sqrt(var + EPS) * p["g1"] + p["b1"], 0.0)
    h = h @ p["w2t"]
    mu, var = jnp.mean(h, 0, keepdims=True), jnp.var(h, 0, keepdims=True)
    h = jnp.maximum((h - mu) / jnp.sqrt(var + EPS) * p["g2"] + p["b2"], 0.0)
    return h @ p["w3t"] + p["b3"]


if __name__ == "__main__":
    key = jax.random.PRNGKey(0)
    kx, kp, kx2 = jax.random.split(key, 3)

    input_size_list = [32, 64, 32]
    output_size = 10
    params = init_params(kp, input_size_list, output_size)

    # ---- fused path, f32 matmuls (tight tolerance vs. f32 reference) ----
    B = 8
    x = jax.random.normal(kx, (B, input_size_list[0]), jnp.float32)
    prepped_f32 = prepare_params(params, jnp.float32)
    out = jax.block_until_ready(multiple_nonlinear_classifier(x, prepped_f32))
    ref = _reference(x, params)
    assert out.shape == (B, output_size)
    assert jnp.allclose(out, ref, atol=1e-3, rtol=1e-3)

    # ---- fused path, bf16 matmul operands (v6e/v7x fast path) ----
    prepped_bf16 = prepare_params(params, jnp.bfloat16)
    out_bf16 = jax.block_until_ready(
        multiple_nonlinear_classifier(x, prepped_bf16))
    assert out_bf16.shape == (B, output_size)
    assert bool(jnp.all(jnp.isfinite(out_bf16)))
    assert jnp.allclose(out_bf16, ref, atol=0.3, rtol=0.3)

    # ---- batch-tiled path, f32 intermediates (structure check, tight tol) ----
    B2, TB = 1024, 512
    x2 = jax.random.normal(kx2, (B2, input_size_list[0]), jnp.float32)
    ref2 = _reference(x2, params)
    out2 = jax.block_until_ready(
        multiple_nonlinear_classifier_tiled(x2, prepped_f32, tb=TB,
                                            h_dtype=jnp.float32))
    assert out2.shape == (B2, output_size)
    assert jnp.allclose(out2, ref2, atol=2e-3, rtol=2e-3)

    # ---- batch-tiled path, bf16 intermediates (HBM-bound perf config) ----
    out2_bf16 = jax.block_until_ready(
        multiple_nonlinear_classifier_tiled(x2, prepped_f32, tb=TB,
                                            h_dtype=jnp.bfloat16))
    assert out2_bf16.shape == (B2, output_size)
    assert bool(jnp.all(jnp.isfinite(out2_bf16)))
    assert jnp.allclose(out2_bf16, ref2, atol=0.2, rtol=0.2)

    print("KERNEL_OK")
</pallas_src>

<mosaic_0001>
module attributes {stable_mosaic.version = 11 : i64} {
  func.func @_fused_kernel(%arg0: memref<8x32xf32, #tpu.memory_space<vmem>>, %arg1: memref<32x128xf32, #tpu.memory_space<vmem>>, %arg2: memref<128x128xf32, #tpu.memory_space<vmem>>, %arg3: memref<128x128xf32, #tpu.memory_space<vmem>>, %arg4: memref<8x128xf32, #tpu.memory_space<vmem>>, %arg5: memref<8x128xf32, #tpu.memory_space<vmem>>) attributes {dimension_semantics = [], scalar_prefetch = 0 : i64, scratch_operands = 0 : i64, tpu.core_type = #tpu.core_type<tc>} {
    %cst = arith.constant 1.000000e+00 : f32
    %0 = vector.broadcast %cst : f32 to vector<1x8xf32>
    %c0 = arith.constant 0 : index
    %c0_0 = arith.constant 0 : index
    %1 = vector.load %arg0[%c0, %c0_0] : memref<8x32xf32, #tpu.memory_space<vmem>>, vector<8x32xf32>
    %c0_1 = arith.constant 0 : index
    %c0_2 = arith.constant 0 : index
    %2 = vector.load %arg1[%c0_1, %c0_2] : memref<32x128xf32, #tpu.memory_space<vmem>>, vector<32x128xf32>
    %cst_3 = arith.constant dense<0.000000e+00> : vector<8x128xf32>
    %3 = tpu.matmul %1, %2, %cst_3 {dimension_numbers = #tpu.dot_dimension_numbers<[1], [0], [0], [1], [0, 0, 1, 1], [], []>} : vector<8x32xf32>, vector<32x128xf32>, vector<8x128xf32> -> vector<8x128xf32>
    %cst_4 = arith.constant dense<0.000000e+00> : vector<1x128xf32>
    %4 = tpu.matmul %0, %3, %cst_4 {dimension_numbers = #tpu.dot_dimension_numbers<[1], [0], [0], [1], [0, 0, 1, 1], [], []>} : vector<1x8xf32>, vector<8x128xf32>, vector<1x128xf32> -> vector<1x128xf32>
    %5 = arith.mulf %3, %3 : vector<8x128xf32>
    %cst_5 = arith.constant dense<0.000000e+00> : vector<1x128xf32>
    %6 = tpu.matmul %0, %5, %cst_5 {dimension_numbers = #tpu.dot_dimension_numbers<[1], [0], [0], [1], [0, 0, 1, 1], [], []>} : vector<1x8xf32>, vector<8x128xf32>, vector<1x128xf32> -> vector<1x128xf32>
    %cst_6 = arith.constant 1.250000e-01 : f32
    %7 = vector.broadcast %cst_6 : f32 to vector<1x128xf32>
    %8 = arith.mulf %4, %7 : vector<1x128xf32>
    %cst_7 = arith.constant 1.250000e-01 : f32
    %9 = vector.broadcast %cst_7 : f32 to vector<1x128xf32>
    %10 = arith.mulf %6, %9 : vector<1x128xf32>
    %11 = arith.mulf %8, %8 : vector<1x128xf32>
    %12 = arith.subf %10, %11 : vector<1x128xf32>
    %cst_8 = arith.constant 0.000000e+00 : f32
    %13 = vector.broadcast %cst_8 : f32 to vector<1x128xf32>
    %14 = arith.maximumf %12, %13 : vector<1x128xf32>
    %c0_9 = arith.constant 0 : index
    %c0_10 = arith.constant 0 : index
    %15 = vector.load %arg4[%c0_9, %c0_10] : memref<8x128xf32, #tpu.memory_space<vmem>>, vector<1x128xf32>
    %cst_11 = arith.constant 9.99999974E-6 : f32
    %16 = vector.broadcast %cst_11 : f32 to vector<1x128xf32>
    %17 = arith.addf %14, %16 : vector<1x128xf32>
    %18 = math.rsqrt %17 : vector<1x128xf32>
    %19 = arith.mulf %15, %18 : vector<1x128xf32>
    %c1 = arith.constant 1 : index
    %c0_12 = arith.constant 0 : index
    %20 = vector.load %arg4[%c1, %c0_12] : memref<8x128xf32, #tpu.memory_space<vmem>>, vector<1x128xf32>
    %21 = arith.mulf %8, %19 : vector<1x128xf32>
    %22 = arith.subf %20, %21 : vector<1x128xf32>
    %23 = vector.broadcast %19 : vector<1x128xf32> to vector<8x128xf32>
    %24 = arith.mulf %3, %23 : vector<8x128xf32>
    %25 = vector.broadcast %22 : vector<1x128xf32> to vector<8x128xf32>
    %26 = arith.addf %24, %25 : vector<8x128xf32>
    %cst_13 = arith.constant 0.000000e+00 : f32
    %27 = vector.broadcast %cst_13 : f32 to vector<8x128xf32>
    %28 = arith.maximumf %26, %27 : vector<8x128xf32>
    %c0_14 = arith.constant 0 : index
    %c0_15 = arith.constant 0 : index
    %29 = vector.load %arg2[%c0_14, %c0_15] : memref<128x128xf32, #tpu.memory_space<vmem>>, vector<128x128xf32>
    %cst_16 = arith.constant dense<0.000000e+00> : vector<8x128xf32>
    %30 = tpu.matmul %28, %29, %cst_16 {dimension_numbers = #tpu.dot_dimension_numbers<[1], [0], [0], [1], [0, 0, 1, 1], [], []>} : vector<8x128xf32>, vector<128x128xf32>, vector<8x128xf32> -> vector<8x128xf32>
    %cst_17 = arith.constant dense<0.000000e+00> : vector<1x128xf32>
    %31 = tpu.matmul %0, %30, %cst_17 {dimension_numbers = #tpu.dot_dimension_numbers<[1], [0], [0], [1], [0, 0, 1, 1], [], []>} : vector<1x8xf32>, vector<8x128xf32>, vector<1x128xf32> -> vector<1x128xf32>
    %32 = arith.mulf %30, %30 : vector<8x128xf32>
    %cst_18 = arith.constant dense<0.000000e+00> : vector<1x128xf32>
    %33 = tpu.matmul %0, %32, %cst_18 {dimension_numbers = #tpu.dot_dimension_numbers<[1], [0], [0], [1], [0, 0, 1, 1], [], []>} : vector<1x8xf32>, vector<8x128xf32>, vector<1x128xf32> -> vector<1x128xf32>
    %cst_19 = arith.constant 1.250000e-01 : f32
    %34 = vector.broadcast %cst_19 : f32 to vector<1x128xf32>
    %35 = arith.mulf %31, %34 : vector<1x128xf32>
    %cst_20 = arith.constant 1.250000e-01 : f32
    %36 = vector.broadcast %cst_20 : f32 to vector<1x128xf32>
    %37 = arith.mulf %33, %36 : vector<1x128xf32>
    %38 = arith.mulf %35, %35 : vector<1x128xf32>
    %39 = arith.subf %37, %38 : vector<1x128xf32>
    %cst_21 = arith.constant 0.000000e+00 : f32
    %40 = vector.broadcast %cst_21 : f32 to vector<1x128xf32>
    %41 = arith.maximumf %39, %40 : vector<1x128xf32>
    %c2 = arith.constant 2 : index
    %c0_22 = arith.constant 0 : index
    %42 = vector.load %arg4[%c2, %c0_22] : memref<8x128xf32, #tpu.memory_space<vmem>>, vector<1x128xf32>
    %cst_23 = arith.constant 9.99999974E-6 : f32
    %43 = vector.broadcast %cst_23 : f32 to vector<1x128xf32>
    %44 = arith.addf %41, %43 : vector<1x128xf32>
    %45 = math.rsqrt %44 : vector<1x128xf32>
    %46 = arith.mulf %42, %45 : vector<1x128xf32>
    %c3 = arith.constant 3 : index
    %c0_24 = arith.constant 0 : index
    %47 = vector.load %arg4[%c3, %c0_24] : memref<8x128xf32, #tpu.memory_space<vmem>>, vector<1x128xf32>
    %48 = arith.mulf %35, %46 : vector<1x128xf32>
    %49 = arith.subf %47, %48 : vector<1x128xf32>
    %50 = vector.broadcast %46 : vector<1x128xf32> to vector<8x128xf32>
    %51 = arith.mulf %30, %50 : vector<8x128xf32>
    %52 = vector.broadcast %49 : vector<1x128xf32> to vector<8x128xf32>
    %53 = arith.addf %51, %52 : vector<8x128xf32>
    %cst_25 = arith.constant 0.000000e+00 : f32
    %54 = vector.broadcast %cst_25 : f32 to vector<8x128xf32>
    %55 = arith.maximumf %53, %54 : vector<8x128xf32>
    %c0_26 = arith.constant 0 : index
    %c0_27 = arith.constant 0 : index
    %56 = vector.load %arg3[%c0_26, %c0_27] : memref<128x128xf32, #tpu.memory_space<vmem>>, vector<128x128xf32>
    %cst_28 = arith.constant dense<0.000000e+00> : vector<8x128xf32>
    %57 = tpu.matmul %55, %56, %cst_28 {dimension_numbers = #tpu.dot_dimension_numbers<[1], [0], [0], [1], [0, 0, 1, 1], [], []>} : vector<8x128xf32>, vector<128x128xf32>, vector<8x128xf32> -> vector<8x128xf32>
    %c4 = arith.constant 4 : index
    %c0_29 = arith.constant 0 : index
    %58 = vector.load %arg4[%c4, %c0_29] : memref<8x128xf32, #tpu.memory_space<vmem>>, vector<1x128xf32>
    %59 = vector.broadcast %58 : vector<1x128xf32> to vector<8x128xf32>
    %60 = arith.addf %57, %59 : vector<8x128xf32>
    %c0_30 = arith.constant 0 : index
    %c0_31 = arith.constant 0 : index
    %61 = vector.load %arg5[%c0_30, %c0_31] : memref<8x128xf32, #tpu.memory_space<vmem>>, vector<8x128xf32>
    tpu.vector_store %arg5[%c0_30, %c0_31], %60 {strides = array<i32>} : memref<8x128xf32, #tpu.memory_space<vmem>>, vector<8x128xf32>,
    return
  }
}

</mosaic_0001>

<llo_original>
// kernel: tpu_custom_call.1
$region0: #{tpu_custom_call.1}
  #allocation0 [shape = 'u32[]', space=smem, size = 0x4, offset = 0x4, fixed_abs, tag = 'smem constant byte address 0x4 - core index']
  #allocation1 [shape = 'u32[144,128]{1,0:T(1,128)}', space=vmem, size = 0x12000, scoped, tag = 'internal scratch']
  %s0 = inlined_call_operand.hbm [shape: f32[8,32], index: 0, kind: input, shape index: {}]
  %s1 = inlined_call_operand.hbm [shape: f32[32,128], index: 1, kind: input, shape index: {}]
  %s2 = inlined_call_operand.hbm [shape: f32[128,128], index: 2, kind: input, shape index: {}]
  %s3 = inlined_call_operand.hbm [shape: f32[128,128], index: 3, kind: input, shape index: {}]
  %s4 = inlined_call_operand.hbm [shape: f32[8,128], index: 4, kind: input, shape index: {}]
  %s5 = inlined_call_operand.hbm [shape: f32[8,128], index: 5, kind: output, shape index: {}]
  %s6 = sld [smem:[#allocation0]]
  $region50: #{tpu_custom_call.1} parent=0
    _
  %s8 = ssub.s32 1, %s6
  %s9 = scalar_select 0, %s8, %s6
  $region1: #{tpu_custom_call.1} parent=0
    #allocation2 [shape = 'u8[4096]{0}', space=vmem, size = 0x1000, scoped, tag = 'input window, operand 0, single buffered']
    #allocation3 [shape = 's32[1]{0}', space=sflag, size = 0x4, scoped, tag = 'scoped memory for tpu_custom_call.1']
    #allocation4 [shape = 's32[1]{0}', space=sflag, size = 0x4, scoped, tag = 'scoped memory for tpu_custom_call.1']
    #allocation5 [shape = 'u8[16384]{0}', space=vmem, size = 0x4000, scoped, tag = 'input window, operand 1, single buffered']
    #allocation6 [shape = 's32[1]{0}', space=sflag, size = 0x4, scoped, tag = 'scoped memory for tpu_custom_call.1']
    #allocation7 [shape = 'u8[65536]{0}', space=vmem, size = 0x10000, scoped, tag = 'input window, operand 2, single buffered']
    #allocation8 [shape = 'u8[65536]{0}', space=vmem, size = 0x10000, scoped, tag = 'input window, operand 3, single buffered']
    #allocation9 [shape = 's32[1]{0}', space=sflag, size = 0x4, scoped, tag = 'scoped memory for tpu_custom_call.1']
    #allocation10 [shape = 'u8[4096]{0}', space=vmem, size = 0x1000, scoped, tag = 'input window, operand 4, single buffered']
    #allocation11 [shape = 'u8[4096]{0}', space=vmem, size = 0x1000, scoped, tag = 'output window, operand 0, single buffered']
    %10 = vsyncpa [#allocation3], 0
    %11 = vsyncpa [#allocation6], 0
    %12 = vsyncpa [#allocation9], 0
    %13 = vsyncpa [#allocation4], 0
    // Predicated region
    $region2: #{tpu_custom_call.1} parent=1 // pred_check
      _
    $region3: #{tpu_custom_call.1} parent=1 // pred_check_branch
      %15 = sbr.rel (0) target = $region5
    $region4: #{tpu_custom_call.1} parent=1 // pred_region
      %s17 = ssub.s32 128, 128
      %18 = vsyncadd [#allocation3], %s17
      %s20 = sshll.u32 [#allocation2], 4
      %s21 = int_to_ptr.vmem [resolvable:$true] %s20
      %23 = dma.hbm_to_vmem [thread:$0]  %s0, 128, %s21, [#allocation3]
    $region5: #{tpu_custom_call.1} parent=1 // pred_fallthru
      _
    // Predicated region
    $region6: #{tpu_custom_call.1} parent=1 // pred_check
      _
    $region7: #{tpu_custom_call.1} parent=1 // pred_check_branch
      %25 = sbr.rel (0) target = $region9
    $region8: #{tpu_custom_call.1} parent=1 // pred_region
      %s27 = ssub.s32 512, 512
      %28 = vsyncadd [#allocation6], %s27
      %s29 = sshll.u32 [#allocation5], 4
      %s30 = int_to_ptr.vmem [resolvable:$true] %s29
      %35 = dma.hbm_to_vmem [thread:$0]  %s1, 512, %s30, [#allocation6], 128, 128, 8
    $region9: #{tpu_custom_call.1} parent=1 // pred_fallthru
      _
    // Predicated region
    $region10: #{tpu_custom_call.1} parent=1 // pred_check
      _
    $region11: #{tpu_custom_call.1} parent=1 // pred_check_branch
      %37 = sbr.rel (0) target = $region13
    $region12: #{tpu_custom_call.1} parent=1 // pred_region
      %s39 = ssub.s32 2048, 2048
      %40 = vsyncadd [#allocation6], %s39
      %s41 = sshll.u32 [#allocation7], 4
      %s42 = int_to_ptr.vmem [resolvable:$true] %s41
      %47 = dma.hbm_to_vmem [thread:$0]  %s2, 2048, %s42, [#allocation6], 128, 128, 8
    $region13: #{tpu_custom_call.1} parent=1 // pred_fallthru
      _
    // Predicated region
    $region14: #{tpu_custom_call.1} parent=1 // pred_check
      _
    $region15: #{tpu_custom_call.1} parent=1 // pred_check_branch
      %49 = sbr.rel (0) target = $region17
    $region16: #{tpu_custom_call.1} parent=1 // pred_region
      %s51 = ssub.s32 2048, 2048
      %52 = vsyncadd [#allocation9], %s51
      %s53 = sshll.u32 [#allocation8], 4
      %s54 = int_to_ptr.vmem [resolvable:$true] %s53
      %59 = dma.hbm_to_vmem [thread:$0]  %s3, 2048, %s54, [#allocation9], 128, 128, 8
    $region17: #{tpu_custom_call.1} parent=1 // pred_fallthru
      _
    // Predicated region
    $region18: #{tpu_custom_call.1} parent=1 // pred_check
      _
    $region19: #{tpu_custom_call.1} parent=1 // pred_check_branch
      %61 = sbr.rel (0) target = $region21
    $region20: #{tpu_custom_call.1} parent=1 // pred_region
      %s63 = ssub.s32 128, 128
      %64 = vsyncadd [#allocation9], %s63
      %s66 = sshll.u32 [#allocation10], 4
      %s67 = int_to_ptr.vmem [resolvable:$true] %s66
      %69 = dma.hbm_to_vmem [thread:$0]  %s4, 128, %s67, [#allocation9]
    $region21: #{tpu_custom_call.1} parent=1 // pred_fallthru
      _
    // Predicated region
    $region22: #{tpu_custom_call.1} parent=1 // pred_check
      _
    $region23: #{tpu_custom_call.1} parent=1 // pred_check_branch
      %71 = sbr.rel (0) target = $region25
    $region24: #{tpu_custom_call.1} parent=1 // pred_region
      %72 = dma.done [#allocation3], 128
    $region25: #{tpu_custom_call.1} parent=1 // pred_fallthru
      _
    // Predicated region
    $region26: #{tpu_custom_call.1} parent=1 // pred_check
      _
    $region27: #{tpu_custom_call.1} parent=1 // pred_check_branch
      %74 = sbr.rel (0) target = $region29
    $region28: #{tpu_custom_call.1} parent=1 // pred_region
      %75 = dma.done [#allocation6], 512
    $region29: #{tpu_custom_call.1} parent=1 // pred_fallthru
      _
    // Predicated region
    $region30: #{tpu_custom_call.1} parent=1 // pred_check
      _
    $region31: #{tpu_custom_call.1} parent=1 // pred_check_branch
      %77 = sbr.rel (0) target = $region33
    $region32: #{tpu_custom_call.1} parent=1 // pred_region
      %78 = dma.done [#allocation6], 2048
    $region33: #{tpu_custom_call.1} parent=1 // pred_fallthru
      _
    // Predicated region
    $region34: #{tpu_custom_call.1} parent=1 // pred_check
      _
    $region35: #{tpu_custom_call.1} parent=1 // pred_check_branch
      %80 = sbr.rel (0) target = $region37
    $region36: #{tpu_custom_call.1} parent=1 // pred_region
      %81 = dma.done [#allocation9], 2048
    $region37: #{tpu_custom_call.1} parent=1 // pred_fallthru
      _
    // Predicated region
    $region38: #{tpu_custom_call.1} parent=1 // pred_check
      _
    $region39: #{tpu_custom_call.1} parent=1 // pred_check_branch
      %83 = sbr.rel (0) target = $region41
    $region40: #{tpu_custom_call.1} parent=1 // pred_region
      %84 = dma.done [#allocation9], 128
    $region41: #{tpu_custom_call.1} parent=1 // pred_fallthru
      _
    %v85 = vld [vmem:[#allocation2] sm:$0xff]
    %v86 = vld [vmem:[#allocation5] sm:$0xff]
    %v87 = vld [vmem:[#allocation5 + $0x8] sm:$0xff]
    %v88 = vld [vmem:[#allocation5 + $0x10] sm:$0xff]
    %v89 = vld [vmem:[#allocation5 + $0x18] sm:$0xff]
    %vm90 = vcmask 261120
    %v92 = vsel %vm90, %v85, 0
    %94 = vmatprep.subr.mxu0 0.0
    %95 = vmatpush1.msra.mxu0 0.0
    %96 = vmatprep.subr.mxu0 0.0
    %97 = vmatpush1.msra.mxu0 0.0
    %98 = vmatprep.subr.mxu0 0.0
    %99 = vmatpush1.msra.mxu0 0.0
    %100 = vmatprep.subr.mxu0 0.0
    %101 = vmatpush1.msra.mxu0 0.0
    %102 = vmatprep.subr.mxu0 0.0
    %103 = vmatpush1.msra.mxu0 0.0
    %104 = vmatprep.subr.mxu0 0.0
    %105 = vmatpush1.msra.mxu0 0.0
    %106 = vmatprep.subr.mxu0 0.0
    %107 = vmatpush1.msra.mxu0 0.0
    %108 = vmatprep.subr.mxu0 0.0
    %109 = vmatpush1.msra.mxu0 0.0
    %110 = vmatprep.subr.mxu0 0.0
    %111 = vmatpush1.msra.mxu0 0.0
    %112 = vmatprep.subr.mxu0 0.0
    %113 = vmatpush1.msra.mxu0 0.0
    %114 = vmatprep.subr.mxu0 0.0
    %115 = vmatpush1.msra.mxu0 0.0
    %116 = vmatprep.subr.mxu0 0.0
    %117 = vmatpush1.msra.mxu0 0.0
    %118 = vmatprep.subr.mxu0 0.0
    %119 = vmatpush1.msra.mxu0 %v89
    %120 = vmatprep.subr.mxu0 0.0
    %121 = vmatpush1.msra.mxu0 %v88
    %122 = vmatprep.subr.mxu0 0.0
    %123 = vmatpush1.msra.mxu0 %v87
    %124 = vmatprep.subr.mxu0 0.0
    %125 = vmatpush1.msra.mxu0 %v86
    %126 = vmatprep.subr.mxu0 0.0
    %127 = vmatpush2.msra.mxu0 0.0
    %128 = vmatprep.subr.mxu0 0.0
    %129 = vmatpush2.msra.mxu0 0.0
    %130 = vmatprep.subr.mxu0 0.0
    %131 = vmatpush2.msra.mxu0 0.0
    %132 = vmatprep.subr.mxu0 0.0
    %133 = vmatpush2.msra.mxu0 0.0
    %134 = vmatprep.subr.mxu0 0.0
    %135 = vmatpush2.msra.mxu0 0.0
    %136 = vmatprep.subr.mxu0 0.0
    %137 = vmatpush2.msra.mxu0 0.0
    %138 = vmatprep.subr.mxu0 0.0
    %139 = vmatpush2.msra.mxu0 0.0
    %140 = vmatprep.subr.mxu0 0.0
    %141 = vmatpush2.msra.mxu0 0.0
    %142 = vmatprep.subr.mxu0 0.0
    %143 = vmatpush2.msra.mxu0 0.0
    %144 = vmatprep.subr.mxu0 0.0
    %145 = vmatpush2.msra.mxu0 0.0
    %146 = vmatprep.subr.mxu0 0.0
    %147 = vmatpush2.msra.mxu0 0.0
    %148 = vmatprep.subr.mxu0 0.0
    %149 = vmatpush2.msra.mxu0 0.0
    %150 = vmatprep.subr.mxu0 0.0
    %151 = vmatpush2.msra.mxu0 0.0
    %152 = vmatprep.subr.mxu0 0.0
    %153 = vmatpush2.msra.mxu0 0.0
    %154 = vmatprep.subr.mxu0 0.0
    %155 = vmatpush2.msra.mxu0 0.0
    %156 = vmatprep.subr.mxu0 0.0
    %157 = vmatpush2.msra.mxu0 0.0
    %158 = vmatprep.mubr.f32.mxu0 0.0
    %159 = vmatmul.mubr.f32.gmra.mxu0 %v92
    %v160 = vpop.f32.mrf.mxu0
    %v161 = vadd.f32 0.0, %v160
    %v162 = vpop.f32.mrf.mxu0
    %163 = vdwg.mxu0
    %vm164 = vcmask 64512
    %v166 = vsel %vm164, 1.0, 0
    %168 = vmatprep.subr.mxu0 0.0
    %169 = vmatpush1.msra.mxu0 0.0
    %170 = vmatprep.subr.mxu0 0.0
    %171 = vmatpush1.msra.mxu0 0.0
    %172 = vmatprep.subr.mxu0 0.0
    %173 = vmatpush1.msra.mxu0 0.0
    %174 = vmatprep.subr.mxu0 0.0
    %175 = vmatpush1.msra.mxu0 0.0
    %176 = vmatprep.subr.mxu0 0.0
    %177 = vmatpush1.msra.mxu0 0.0
    %178 = vmatprep.subr.mxu0 0.0
    %179 = vmatpush1.msra.mxu0 0.0
    %180 = vmatprep.subr.mxu0 0.0
    %181 = vmatpush1.msra.mxu0 0.0
    %182 = vmatprep.subr.mxu0 0.0
    %183 = vmatpush1.msra.mxu0 0.0
    %184 = vmatprep.subr.mxu0 0.0
    %185 = vmatpush1.msra.mxu0 0.0
    %186 = vmatprep.subr.mxu0 0.0
    %187 = vmatpush1.msra.mxu0 0.0
    %188 = vmatprep.subr.mxu0 0.0
    %189 = vmatpush1.msra.mxu0 0.0
    %190 = vmatprep.subr.mxu0 0.0
    %191 = vmatpush1.msra.mxu0 0.0
    %192 = vmatprep.subr.mxu0 0.0
    %193 = vmatpush1.msra.mxu0 0.0
    %194 = vmatprep.subr.mxu0 0.0
    %195 = vmatpush1.msra.mxu0 0.0
    %196 = vmatprep.subr.mxu0 0.0
    %197 = vmatpush1.msra.mxu0 0.0
    %198 = vmatprep.subr.mxu0 0.0
    %199 = vmatpush1.msra.mxu0 %v161
    %200 = vmatprep.subr.mxu0 0.0
    %201 = vmatpush2.msra.mxu0 0.0
    %202 = vmatprep.subr.mxu0 0.0
    %203 = vmatpush2.msra.mxu0 0.0
    %204 = vmatprep.subr.mxu0 0.0
    %205 = vmatpush2.msra.mxu0 0.0
    %206 = vmatprep.subr.mxu0 0.0
    %207 = vmatpush2.msra.mxu0 0.0
    %208 = vmatprep.subr.mxu0 0.0
    %209 = vmatpush2.msra.mxu0 0.0
    %210 = vmatprep.subr.mxu0 0.0
    %211 = vmatpush2.msra.mxu0 0.0
    %212 = vmatprep.subr.mxu0 0.0
    %213 = vmatpush2.msra.mxu0 0.0
    %214 = vmatprep.subr.mxu0 0.0
    %215 = vmatpush2.msra.mxu0 0.0
    %216 = vmatprep.subr.mxu0 0.0
    %217 = vmatpush2.msra.mxu0 0.0
    %218 = vmatprep.subr.mxu0 0.0
    %219 = vmatpush2.msra.mxu0 0.0
    %220 = vmatprep.subr.mxu0 0.0
    %221 = vmatpush2.msra.mxu0 0.0
    %222 = vmatprep.subr.mxu0 0.0
    %223 = vmatpush2.msra.mxu0 0.0
    %224 = vmatprep.subr.mxu0 0.0
    %225 = vmatpush2.msra.mxu0 0.0
    %226 = vmatprep.subr.mxu0 0.0
    %227 = vmatpush2.msra.mxu0 0.0
    %228 = vmatprep.subr.mxu0 0.0
    %229 = vmatpush2.msra.mxu0 0.0
    %230 = vmatprep.subr.mxu0 0.0
    %231 = vmatpush2.msra.mxu0 0.0
    %232 = vmatprep.mubr.f32.mxu0 0.0
    %233 = vmatmul.mubr.f32.gmra.mxu0 %v166
    %v234 = vpop.f32.mrf.mxu0
    %v235 = vadd.f32 0.0, %v234
    %v236 = vpop.f32.mrf.mxu0
    %237 = vdwg.mxu0
    %v238 = vmul.f32 %v161, %v161
    %239 = vmatprep.subr.mxu0 0.0
    %240 = vmatpush1.msra.mxu0 0.0
    %241 = vmatprep.subr.mxu0 0.0
    %242 = vmatpush1.msra.mxu0 0.0
    %243 = vmatprep.subr.mxu0 0.0
    %244 = vmatpush1.msra.mxu0 0.0
    %245 = vmatprep.subr.mxu0 0.0
    %246 = vmatpush1.msra.mxu0 0.0
    %247 = vmatprep.subr.mxu0 0.0
    %248 = vmatpush1.msra.mxu0 0.0
    %249 = vmatprep.subr.mxu0 0.0
    %250 = vmatpush1.msra.mxu0 0.0
    %251 = vmatprep.subr.mxu0 0.0
    %252 = vmatpush1.msra.mxu0 0.0
    %253 = vmatprep.subr.mxu0 0.0
    %254 = vmatpush1.msra.mxu0 0.0
    %255 = vmatprep.subr.mxu0 0.0
    %256 = vmatpush1.msra.mxu0 0.0
    %257 = vmatprep.subr.mxu0 0.0
    %258 = vmatpush1.msra.mxu0 0.0
    %259 = vmatprep.subr.mxu0 0.0
    %260 = vmatpush1.msra.mxu0 0.0
    %261 = vmatprep.subr.mxu0 0.0
    %262 = vmatpush1.msra.mxu0 0.0
    %263 = vmatprep.subr.mxu0 0.0
    %264 = vmatpush1.msra.mxu0 0.0
    %265 = vmatprep.subr.mxu0 0.0
    %266 = vmatpush1.msra.mxu0 0.0
    %267 = vmatprep.subr.mxu0 0.0
    %268 = vmatpush1.msra.mxu0 0.0
    %269 = vmatprep.subr.mxu0 0.0
    %270 = vmatpush1.msra.mxu0 %v238
    %271 = vmatprep.subr.mxu0 0.0
    %272 = vmatpush2.msra.mxu0 0.0
    %273 = vmatprep.subr.mxu0 0.0
    %274 = vmatpush2.msra.mxu0 0.0
    %275 = vmatprep.subr.mxu0 0.0
    %276 = vmatpush2.msra.mxu0 0.0
    %277 = vmatprep.subr.mxu0 0.0
    %278 = vmatpush2.msra.mxu0 0.0
    %279 = vmatprep.subr.mxu0 0.0
    %280 = vmatpush2.msra.mxu0 0.0
    %281 = vmatprep.subr.mxu0 0.0
    %282 = vmatpush2.msra.mxu0 0.0
    %283 = vmatprep.subr.mxu0 0.0
    %284 = vmatpush2.msra.mxu0 0.0
    %285 = vmatprep.subr.mxu0 0.0
    %286 = vmatpush2.msra.mxu0 0.0
    %287 = vmatprep.subr.mxu0 0.0
    %288 = vmatpush2.msra.mxu0 0.0
    %289 = vmatprep.subr.mxu0 0.0
    %290 = vmatpush2.msra.mxu0 0.0
    %291 = vmatprep.subr.mxu0 0.0
    %292 = vmatpush2.msra.mxu0 0.0
    %293 = vmatprep.subr.mxu0 0.0
    %294 = vmatpush2.msra.mxu0 0.0
    %295 = vmatprep.subr.mxu0 0.0
    %296 = vmatpush2.msra.mxu0 0.0
    %297 = vmatprep.subr.mxu0 0.0
    %298 = vmatpush2.msra.mxu0 0.0
    %299 = vmatprep.subr.mxu0 0.0
    %300 = vmatpush2.msra.mxu0 0.0
    %301 = vmatprep.subr.mxu0 0.0
    %302 = vmatpush2.msra.mxu0 0.0
    %303 = vmatprep.mubr.f32.mxu0 0.0
    %304 = vmatmul.mubr.f32.gmra.mxu0 %v166
    %v305 = vpop.f32.mrf.mxu0
    %v306 = vadd.f32 0.0, %v305
    %v307 = vpop.f32.mrf.mxu0
    %308 = vdwg.mxu0
    %v309 = vmul.f32 %v235, 0.125
    %v310 = vmul.f32 %v306, 0.125
    %v311 = vmul.f32 %v309, %v309
    %v312 = vsub.f32 %v310, %v311
    %v313 = vmax.f32 %v312, 0.0
    %v314 = vld [vmem:[#allocation10] sm:$0x1]
    %v315 = vadd.f32 %v313, 1e-05
    %v316 = vrsqrt.pop %v315
    %v317 = vmul.f32 %v314, %v316
    %v318 = vld [vmem:[#allocation10 + $0x1] sm:$0x1]
    %v319 = vmul.f32 %v309, %v317
    %v320 = vsub.f32 %v318, %v319
    %v321 = vlaneseq
    %v322 = vshrl.u32 %v321, 7
    %v323 = vsub.s32 0, %v322
    %v324 = vrot.slane %v317, %v323
    %v325 = vmul.f32 %v161, %v324
    %v326 = vlaneseq
    %v327 = vshrl.u32 %v326, 7
    %v328 = vsub.s32 0, %v327
    %v329 = vrot.slane %v320, %v328
    %v330 = vadd.f32 %v325, %v329
    %v331 = vmax.f32 %v330, 0.0
    %v332 = vld [vmem:[#allocation7] sm:$0xff]
    %v333 = vld [vmem:[#allocation7 + $0x8] sm:$0xff]
    %v334 = vld [vmem:[#allocation7 + $0x10] sm:$0xff]
    %v335 = vld [vmem:[#allocation7 + $0x18] sm:$0xff]
    %v336 = vld [vmem:[#allocation7 + $0x20] sm:$0xff]
    %v337 = vld [vmem:[#allocation7 + $0x28] sm:$0xff]
    %v338 = vld [vmem:[#allocation7 + $0x30] sm:$0xff]
    %v339 = vld [vmem:[#allocation7 + $0x38] sm:$0xff]
    %v340 = vld [vmem:[#allocation7 + $0x40] sm:$0xff]
    %v341 = vld [vmem:[#allocation7 + $0x48] sm:$0xff]
    %v342 = vld [vmem:[#allocation7 + $0x50] sm:$0xff]
    %v343 = vld [vmem:[#allocation7 + $0x58] sm:$0xff]
    %v344 = vld [vmem:[#allocation7 + $0x60] sm:$0xff]
    %v345 = vld [vmem:[#allocation7 + $0x68] sm:$0xff]
    %v346 = vld [vmem:[#allocation7 + $0x70] sm:$0xff]
    %v347 = vld [vmem:[#allocation7 + $0x78] sm:$0xff]
    %348 = vmatprep.subr.mxu0 0.0
    %349 = vmatpush1.msra.mxu0 %v347
    %350 = vmatprep.subr.mxu0 0.0
    %351 = vmatpush1.msra.mxu0 %v346
    %352 = vmatprep.subr.mxu0 0.0
    %353 = vmatpush1.msra.mxu0 %v345
    %354 = vmatprep.subr.mxu0 0.0
    %355 = vmatpush1.msra.mxu0 %v344
    %356 = vmatprep.subr.mxu0 0.0
    %357 = vmatpush1.msra.mxu0 %v343
    %358 = vmatprep.subr.mxu0 0.0
    %359 = vmatpush1.msra.mxu0 %v342
    %360 = vmatprep.subr.mxu0 0.0
    %361 = vmatpush1.msra.mxu0 %v341
    %362 = vmatprep.subr.mxu0 0.0
    %363 = vmatpush1.msra.mxu0 %v340
    %364 = vmatprep.subr.mxu0 0.0
    %365 = vmatpush1.msra.mxu0 %v339
    %366 = vmatprep.subr.mxu0 0.0
    %367 = vmatpush1.msra.mxu0 %v338
    %368 = vmatprep.subr.mxu0 0.0
    %369 = vmatpush1.msra.mxu0 %v337
    %370 = vmatprep.subr.mxu0 0.0
    %371 = vmatpush1.msra.mxu0 %v336
    %372 = vmatprep.subr.mxu0 0.0
    %373 = vmatpush1.msra.mxu0 %v335
    %374 = vmatprep.subr.mxu0 0.0
    %375 = vmatpush1.msra.mxu0 %v334
    %376 = vmatprep.subr.mxu0 0.0
    %377 = vmatpush1.msra.mxu0 %v333
    %378 = vmatprep.subr.mxu0 0.0
    %379 = vmatpush1.msra.mxu0 %v332
    %380 = vmatprep.subr.mxu0 0.0
    %381 = vmatpush2.msra.mxu0 0.0
    %382 = vmatprep.subr.mxu0 0.0
    %383 = vmatpush2.msra.mxu0 0.0
    %384 = vmatprep.subr.mxu0 0.0
    %385 = vmatpush2.msra.mxu0 0.0
    %386 = vmatprep.subr.mxu0 0.0
    %387 = vmatpush2.msra.mxu0 0.0
    %388 = vmatprep.subr.mxu0 0.0
    %389 = vmatpush2.msra.mxu0 0.0
    %390 = vmatprep.subr.mxu0 0.0
    %391 = vmatpush2.msra.mxu0 0.0
    %392 = vmatprep.subr.mxu0 0.0
    %393 = vmatpush2.msra.mxu0 0.0
    %394 = vmatprep.subr.mxu0 0.0
    %395 = vmatpush2.msra.mxu0 0.0
    %396 = vmatprep.subr.mxu0 0.0
    %397 = vmatpush2.msra.mxu0 0.0
    %398 = vmatprep.subr.mxu0 0.0
    %399 = vmatpush2.msra.mxu0 0.0
    %400 = vmatprep.subr.mxu0 0.0
    %401 = vmatpush2.msra.mxu0 0.0
    %402 = vmatprep.subr.mxu0 0.0
    %403 = vmatpush2.msra.mxu0 0.0
    %404 = vmatprep.subr.mxu0 0.0
    %405 = vmatpush2.msra.mxu0 0.0
    %406 = vmatprep.subr.mxu0 0.0
    %407 = vmatpush2.msra.mxu0 0.0
    %408 = vmatprep.subr.mxu0 0.0
    %409 = vmatpush2.msra.mxu0 0.0
    %410 = vmatprep.subr.mxu0 0.0
    %411 = vmatpush2.msra.mxu0 0.0
    %412 = vmatprep.mubr.f32.mxu0 0.0
    %413 = vmatmul.mubr.f32.gmra.mxu0 %v331
    %v414 = vpop.f32.mrf.mxu0
    %v415 = vadd.f32 0.0, %v414
    %v416 = vpop.f32.mrf.mxu0
    %417 = vdwg.mxu0
    %418 = vmatprep.subr.mxu0 0.0
    %419 = vmatpush1.msra.mxu0 0.0
    %420 = vmatprep.subr.mxu0 0.0
    %421 = vmatpush1.msra.mxu0 0.0
    %422 = vmatprep.subr.mxu0 0.0
    %423 = vmatpush1.msra.mxu0 0.0
    %424 = vmatprep.subr.mxu0 0.0
    %425 = vmatpush1.msra.mxu0 0.0
    %426 = vmatprep.subr.mxu0 0.0
    %427 = vmatpush1.msra.mxu0 0.0
    %428 = vmatprep.subr.mxu0 0.0
    %429 = vmatpush1.msra.mxu0 0.0
    %430 = vmatprep.subr.mxu0 0.0
    %431 = vmatpush1.msra.mxu0 0.0
    %432 = vmatprep.subr.mxu0 0.0
    %433 = vmatpush1.msra.mxu0 0.0
    %434 = vmatprep.subr.mxu0 0.0
    %435 = vmatpush1.msra.mxu0 0.0
    %436 = vmatprep.subr.mxu0 0.0
    %437 = vmatpush1.msra.mxu0 0.0
    %438 = vmatprep.subr.mxu0 0.0
    %439 = vmatpush1.msra.mxu0 0.0
    %440 = vmatprep.subr.mxu0 0.0
    %441 = vmatpush1.msra.mxu0 0.0
    %442 = vmatprep.subr.mxu0 0.0
    %443 = vmatpush1.msra.mxu0 0.0
    %444 = vmatprep.subr.mxu0 0.0
    %445 = vmatpush1.msra.mxu0 0.0
    %446 = vmatprep.subr.mxu0 0.0
    %447 = vmatpush1.msra.mxu0 0.0
    %448 = vmatprep.subr.mxu0 0.0
    %449 = vmatpush1.msra.mxu0 %v415
    %450 = vmatprep.subr.mxu0 0.0
    %451 = vmatpush2.msra.mxu0 0.0
    %452 = vmatprep.subr.mxu0 0.0
    %453 = vmatpush2.msra.mxu0 0.0
    %454 = vmatprep.subr.mxu0 0.0
    %455 = vmatpush2.msra.mxu0 0.0
    %456 = vmatprep.subr.mxu0 0.0
    %457 = vmatpush2.msra.mxu0 0.0
    %458 = vmatprep.subr.mxu0 0.0
    %459 = vmatpush2.msra.mxu0 0.0
    %460 = vmatprep.subr.mxu0 0.0
    %461 = vmatpush2.msra.mxu0 0.0
    %462 = vmatprep.subr.mxu0 0.0
    %463 = vmatpush2.msra.mxu0 0.0
    %464 = vmatprep.subr.mxu0 0.0
    %465 = vmatpush2.msra.mxu0 0.0
    %466 = vmatprep.subr.mxu0 0.0
    %467 = vmatpush2.msra.mxu0 0.0
    %468 = vmatprep.subr.mxu0 0.0
    %469 = vmatpush2.msra.mxu0 0.0
    %470 = vmatprep.subr.mxu0 0.0
    %471 = vmatpush2.msra.mxu0 0.0
    %472 = vmatprep.subr.mxu0 0.0
    %473 = vmatpush2.msra.mxu0 0.0
    %474 = vmatprep.subr.mxu0 0.0
    %475 = vmatpush2.msra.mxu0 0.0
    %476 = vmatprep.subr.mxu0 0.0
    %477 = vmatpush2.msra.mxu0 0.0
    %478 = vmatprep.subr.mxu0 0.0
    %479 = vmatpush2.msra.mxu0 0.0
    %480 = vmatprep.subr.mxu0 0.0
    %481 = vmatpush2.msra.mxu0 0.0
    %482 = vmatprep.mubr.f32.mxu0 0.0
    %483 = vmatmul.mubr.f32.gmra.mxu0 %v166
    %v484 = vpop.f32.mrf.mxu0
    %v485 = vadd.f32 0.0, %v484
    %v486 = vpop.f32.mrf.mxu0
    %487 = vdwg.mxu0
    %v488 = vmul.f32 %v415, %v415
    %489 = vmatprep.subr.mxu0 0.0
    %490 = vmatpush1.msra.mxu0 0.0
    %491 = vmatprep.subr.mxu0 0.0
    %492 = vmatpush1.msra.mxu0 0.0
    %493 = vmatprep.subr.mxu0 0.0
    %494 = vmatpush1.msra.mxu0 0.0
    %495 = vmatprep.subr.mxu0 0.0
    %496 = vmatpush1.msra.mxu0 0.0
    %497 = vmatprep.subr.mxu0 0.0
    %498 = vmatpush1.msra.mxu0 0.0
    %499 = vmatprep.subr.mxu0 0.0
    %500 = vmatpush1.msra.mxu0 0.0
    %501 = vmatprep.subr.mxu0 0.0
    %502 = vmatpush1.msra.mxu0 0.0
    %503 = vmatprep.subr.mxu0 0.0
    %504 = vmatpush1.msra.mxu0 0.0
    %505 = vmatprep.subr.mxu0 0.0
    %506 = vmatpush1.msra.mxu0 0.0
    %507 = vmatprep.subr.mxu0 0.0
    %508 = vmatpush1.msra.mxu0 0.0
    %509 = vmatprep.subr.mxu0 0.0
    %510 = vmatpush1.msra.mxu0 0.0
    %511 = vmatprep.subr.mxu0 0.0
    %512 = vmatpush1.msra.mxu0 0.0
    %513 = vmatprep.subr.mxu0 0.0
    %514 = vmatpush1.msra.mxu0 0.0
    %515 = vmatprep.subr.mxu0 0.0
    %516 = vmatpush1.msra.mxu0 0.0
    %517 = vmatprep.subr.mxu0 0.0
    %518 = vmatpush1.msra.mxu0 0.0
    %519 = vmatprep.subr.mxu0 0.0
    %520 = vmatpush1.msra.mxu0 %v488
    %521 = vmatprep.subr.mxu0 0.0
    %522 = vmatpush2.msra.mxu0 0.0
    %523 = vmatprep.subr.mxu0 0.0
    %524 = vmatpush2.msra.mxu0 0.0
    %525 = vmatprep.subr.mxu0 0.0
    %526 = vmatpush2.msra.mxu0 0.0
    %527 = vmatprep.subr.mxu0 0.0
    %528 = vmatpush2.msra.mxu0 0.0
    %529 = vmatprep.subr.mxu0 0.0
    %530 = vmatpush2.msra.mxu0 0.0
    %531 = vmatprep.subr.mxu0 0.0
    %532 = vmatpush2.msra.mxu0 0.0
    %533 = vmatprep.subr.mxu0 0.0
    %534 = vmatpush2.msra.mxu0 0.0
    %535 = vmatprep.subr.mxu0 0.0
    %536 = vmatpush2.msra.mxu0 0.0
    %537 = vmatprep.subr.mxu0 0.0
    %538 = vmatpush2.msra.mxu0 0.0
    %539 = vmatprep.subr.mxu0 0.0
    %540 = vmatpush2.msra.mxu0 0.0
    %541 = vmatprep.subr.mxu0 0.0
    %542 = vmatpush2.msra.mxu0 0.0
    %543 = vmatprep.subr.mxu0 0.0
    %544 = vmatpush2.msra.mxu0 0.0
    %545 = vmatprep.subr.mxu0 0.0
    %546 = vmatpush2.msra.mxu0 0.0
    %547 = vmatprep.subr.mxu0 0.0
    %548 = vmatpush2.msra.mxu0 0.0
    %549 = vmatprep.subr.mxu0 0.0
    %550 = vmatpush2.msra.mxu0 0.0
    %551 = vmatprep.subr.mxu0 0.0
    %552 = vmatpush2.msra.mxu0 0.0
    %553 = vmatprep.mubr.f32.mxu0 0.0
    %554 = vmatmul.mubr.f32.gmra.mxu0 %v166
    %v555 = vpop.f32.mrf.mxu0
    %v556 = vadd.f32 0.0, %v555
    %v557 = vpop.f32.mrf.mxu0
    %558 = vdwg.mxu0
    %v559 = vmul.f32 %v485, 0.125
    %v560 = vmul.f32 %v556, 0.125
    %v561 = vmul.f32 %v559, %v559
    %v562 = vsub.f32 %v560, %v561
    %v563 = vmax.f32 %v562, 0.0
    %v564 = vld [vmem:[#allocation10 + $0x2] sm:$0x1]
    %v565 = vadd.f32 %v563, 1e-05
    %v566 = vrsqrt.pop %v565
    %v567 = vmul.f32 %v564, %v566
    %v568 = vld [vmem:[#allocation10 + $0x3] sm:$0x1]
    %v569 = vmul.f32 %v559, %v567
    %v570 = vsub.f32 %v568, %v569
    %v571 = vlaneseq
    %v572 = vshrl.u32 %v571, 7
    %v573 = vsub.s32 0, %v572
    %v574 = vrot.slane %v567, %v573
    %v575 = vmul.f32 %v415, %v574
    %v576 = vlaneseq
    %v577 = vshrl.u32 %v576, 7
    %v578 = vsub.s32 0, %v577
    %v579 = vrot.slane %v570, %v578
    %v580 = vadd.f32 %v575, %v579
    %v581 = vmax.f32 %v580, 0.0
    %v582 = vld [vmem:[#allocation8] sm:$0xff]
    %v583 = vld [vmem:[#allocation8 + $0x8] sm:$0xff]
    %v584 = vld [vmem:[#allocation8 + $0x10] sm:$0xff]
    %v585 = vld [vmem:[#allocation8 + $0x18] sm:$0xff]
    %v586 = vld [vmem:[#allocation8 + $0x20] sm:$0xff]
    %v587 = vld [vmem:[#allocation8 + $0x28] sm:$0xff]
    %v588 = vld [vmem:[#allocation8 + $0x30] sm:$0xff]
    %v589 = vld [vmem:[#allocation8 + $0x38] sm:$0xff]
    %v590 = vld [vmem:[#allocation8 + $0x40] sm:$0xff]
    %v591 = vld [vmem:[#allocation8 + $0x48] sm:$0xff]
    %v592 = vld [vmem:[#allocation8 + $0x50] sm:$0xff]
    %v593 = vld [vmem:[#allocation8 + $0x58] sm:$0xff]
    %v594 = vld [vmem:[#allocation8 + $0x60] sm:$0xff]
    %v595 = vld [vmem:[#allocation8 + $0x68] sm:$0xff]
    %v596 = vld [vmem:[#allocation8 + $0x70] sm:$0xff]
    %v597 = vld [vmem:[#allocation8 + $0x78] sm:$0xff]
    %v598 = vld [vmem:[#allocation10 + $0x4] sm:$0x1]
    %v599 = vlaneseq
    %v600 = vshrl.u32 %v599, 7
    %v601 = vsub.s32 0, %v600
    %v602 = vrot.slane %v598, %v601
    %603 = vmatprep.subr.mxu0 0.0
    %604 = vmatpush1.msra.mxu0 %v597
    %605 = vmatprep.subr.mxu0 0.0
    %606 = vmatpush1.msra.mxu0 %v596
    %607 = vmatprep.subr.mxu0 0.0
    %608 = vmatpush1.msra.mxu0 %v595
    %609 = vmatprep.subr.mxu0 0.0
    %610 = vmatpush1.msra.mxu0 %v594
    %611 = vmatprep.subr.mxu0 0.0
    %612 = vmatpush1.msra.mxu0 %v593
    %613 = vmatprep.subr.mxu0 0.0
    %614 = vmatpush1.msra.mxu0 %v592
    %615 = vmatprep.subr.mxu0 0.0
    %616 = vmatpush1.msra.mxu0 %v591
    %617 = vmatprep.subr.mxu0 0.0
    %618 = vmatpush1.msra.mxu0 %v590
    %619 = vmatprep.subr.mxu0 0.0
    %620 = vmatpush1.msra.mxu0 %v589
    %621 = vmatprep.subr.mxu0 0.0
    %622 = vmatpush1.msra.mxu0 %v588
    %623 = vmatprep.subr.mxu0 0.0
    %624 = vmatpush1.msra.mxu0 %v587
    %625 = vmatprep.subr.mxu0 0.0
    %626 = vmatpush1.msra.mxu0 %v586
    %627 = vmatprep.subr.mxu0 0.0
    %628 = vmatpush1.msra.mxu0 %v585
    %629 = vmatprep.subr.mxu0 0.0
    %630 = vmatpush1.msra.mxu0 %v584
    %631 = vmatprep.subr.mxu0 0.0
    %632 = vmatpush1.msra.mxu0 %v583
    %633 = vmatprep.subr.mxu0 0.0
    %634 = vmatpush1.msra.mxu0 %v582
    %635 = vmatprep.subr.mxu0 0.0
    %636 = vmatpush2.msra.mxu0 0.0
    %637 = vmatprep.subr.mxu0 0.0
    %638 = vmatpush2.msra.mxu0 0.0
    %639 = vmatprep.subr.mxu0 0.0
    %640 = vmatpush2.msra.mxu0 0.0
    %641 = vmatprep.subr.mxu0 0.0
    %642 = vmatpush2.msra.mxu0 0.0
    %643 = vmatprep.subr.mxu0 0.0
    %644 = vmatpush2.msra.mxu0 0.0
    %645 = vmatprep.subr.mxu0 0.0
    %646 = vmatpush2.msra.mxu0 0.0
    %647 = vmatprep.subr.mxu0 0.0
    %648 = vmatpush2.msra.mxu0 0.0
    %649 = vmatprep.subr.mxu0 0.0
    %650 = vmatpush2.msra.mxu0 0.0
    %651 = vmatprep.subr.mxu0 0.0
    %652 = vmatpush2.msra.mxu0 0.0
    %653 = vmatprep.subr.mxu0 0.0
    %654 = vmatpush2.msra.mxu0 0.0
    %655 = vmatprep.subr.mxu0 0.0
    %656 = vmatpush2.msra.mxu0 0.0
    %657 = vmatprep.subr.mxu0 0.0
    %658 = vmatpush2.msra.mxu0 0.0
    %659 = vmatprep.subr.mxu0 0.0
    %660 = vmatpush2.msra.mxu0 0.0
    %661 = vmatprep.subr.mxu0 0.0
    %662 = vmatpush2.msra.mxu0 0.0
    %663 = vmatprep.subr.mxu0 0.0
    %664 = vmatpush2.msra.mxu0 0.0
    %665 = vmatprep.subr.mxu0 0.0
    %666 = vmatpush2.msra.mxu0 0.0
    %667 = vmatprep.mubr.f32.mxu0 0.0
    %668 = vmatmul.mubr.f32.gmra.mxu0 %v581
    %v669 = vpop.f32.mrf.mxu0
    %v670 = vadd.f32 %v602, %v669
    %v671 = vpop.f32.mrf.mxu0
    %672 = vdwg.mxu0
    %673 = vst [vmem:[#allocation11] sm:$0xff] %v670
    // Predicated region
    $region42: #{tpu_custom_call.1} parent=1 // pred_check
      _
    $region43: #{tpu_custom_call.1} parent=1 // pred_check_branch
      %675 = sbr.rel (0) target = $region45
    $region44: #{tpu_custom_call.1} parent=1 // pred_region
      %s677 = ssub.s32 128, 128
      %678 = vsyncadd [#allocation4], %s677
      %s680 = sshll.u32 [#allocation11], 4
      %s681 = int_to_ptr.vmem [resolvable:$true] %s680
      %683 = dma.vmem_to_hbm [thread:$0]  %s681, 128, %s5, [#allocation4]
    $region45: #{tpu_custom_call.1} parent=1 // pred_fallthru
      _
    // Predicated region
    $region46: #{tpu_custom_call.1} parent=1 // pred_check
      _
    $region47: #{tpu_custom_call.1} parent=1 // pred_check_branch
      %685 = sbr.rel (0) target = $region49
    $region48: #{tpu_custom_call.1} parent=1 // pred_region
      %686 = dma.done [#allocation4], 128
    $region49: #{tpu_custom_call.1} parent=1 // pred_fallthru
      _
    %687 = vsyncpa [#allocation3], 1
    %688 = vsyncpa [#allocation6], 1
    %689 = vsyncpa [#allocation9], 1
    %690 = vsyncpa [#allocation4], 1

</llo_original>
